<compile_context>
chip_gen: v5e
topology: v5e:2x2
jax: 0.10.0
libtpu: 0.0.40
codegen_flags: <defaults>
</compile_context>

<pallas_src>
import functools

import jax
import jax.numpy as jnp
from jax import lax
from jax.experimental import pallas as pl
from jax.experimental.pallas import tpu as pltpu

_VMEM_LIMIT_BYTES = 64 * 1024 * 1024   # fits every generation (== v7x physical cap)


# --------------------------- fused bidirectional GRU layer ---------------------------
def _bigru_layer_kernel(*refs, n_in, seq_len, hidden, last_layer):
    T, H = seq_len, hidden
    i = 0
    xs = refs[i:i + n_in]; i += n_in                    # each (T, TB, D_j) time-major
    len_ref = refs[i]; i += 1                           # (TB, 1) int32
    wif = refs[i:i + n_in]; i += n_in                   # (D_j, 3H)
    whf_ref, bgf_ref, bhnf_ref = refs[i:i + 3]; i += 3  # (H, 3H), (1, 3H), (1, H)
    wib = refs[i:i + n_in]; i += n_in
    whb_ref, bgb_ref, bhnb_ref = refs[i:i + 3]; i += 3
    if last_layer:
        cap_ref = refs[i]; i += 1                       # (T, TB, H): (fwd+bwd)/2
    else:
        outf_ref = refs[i]                              # (T, TB, H)
        outb_ref = refs[i + 1]                          # (T, TB, H)
        i += 2
    gif_ref, gib_ref, hf_ref, hb_ref = refs[i:i + 4]    # scratch

    TB = hf_ref.shape[0]

    # ---- hoisted input projection: one big fused-gate GEMM per direction (stays in VMEM) ----
    def input_proj(wi_refs, bias_ref):
        acc = None
        for j in range(n_in):
            x2d = xs[j][...].reshape(T * TB, xs[j].shape[-1])
            m = jnp.dot(x2d, wi_refs[j][...], preferred_element_type=jnp.float32)
            acc = m if acc is None else acc + m
        return (acc + bias_ref[...]).reshape(T, TB, 3 * H)

    gif_ref[...] = input_proj(wif, bgf_ref)
    gib_ref[...] = input_proj(wib, bgb_ref)

    hf_ref[...] = jnp.zeros_like(hf_ref)
    hb_ref[...] = jnp.zeros_like(hb_ref)
    if last_layer:
        cap_ref[...] = jnp.zeros_like(cap_ref)

    # loop-invariant loads / broadcasts hoisted out of the recurrence
    lens = len_ref[...]                                 # (TB, 1) int32
    whf = whf_ref[...]
    whb = whb_ref[...]
    bhnf = jnp.broadcast_to(bhnf_ref[...], (TB, H))
    bhnb = jnp.broadcast_to(bhnb_ref[...], (TB, H))

    def gru_cell(gi, h, wh, bhn):
        gh = jnp.dot(h, wh, preferred_element_type=jnp.float32)      # one fused (H,3H) matmul
        r = jax.nn.sigmoid(gi[:, 0:H] + gh[:, 0:H])
        z = jax.nn.sigmoid(gi[:, H:2 * H] + gh[:, H:2 * H])
        n = jnp.tanh(gi[:, 2 * H:3 * H] + r * (gh[:, 2 * H:3 * H] + bhn))
        return (1.0 - z) * n + z * h

    @pl.loop(0, T)
    def _(t):
        t_rev = T - 1 - t
        # forward direction, timestep t
        hf = hf_ref[...]
        hf_new = gru_cell(gif_ref[t], hf, whf, bhnf)
        vf = lens > t                                   # packed-seq: update only while t < length
        hf_next = jnp.where(vf, hf_new, hf)
        hf_ref[...] = hf_next
        of = jnp.where(vf, hf_next, 0.0)                # pad_packed zero padding
        # backward direction, timestep T-1-t (starts its recurrence at length-1)
        hb = hb_ref[...]
        hb_new = gru_cell(gib_ref[t_rev], hb, whb, bhnb)
        vb = lens > t_rev
        hb_next = jnp.where(vb, hb_new, hb)
        hb_ref[...] = hb_next
        ob = jnp.where(vb, hb_next, 0.0)
        if last_layer:
            # fused (fwd + bwd) / 2 accumulation (each position touched once per direction)
            cap_ref[t] = cap_ref[t] + 0.5 * of
            cap_ref[t_rev] = cap_ref[t_rev] + 0.5 * ob
        else:
            outf_ref[t] = of
            outb_ref[t_rev] = ob


def bigru_layer(xs, lengths_b1, fwd, bwd, *, last_layer, batch_tile=128):
    """One bidirectional GRU layer.

    xs: list of time-major inputs [(T, B, D_j)] (layer 0: embeddings; layer > 0:
        [out_fwd, out_bwd] of the previous layer -- no concat needed).
    fwd/bwd: (wi_list, wh, bias_gi, bias_hn) in x @ W layout (see init_params).
    Returns cap_emb (T, B, H) if last_layer else (out_f, out_b), each (T, B, H).
    """
    T, B, _ = xs[0].shape
    wi_f, wh_f, bg_f, bhn_f = fwd
    wi_b, wh_b, bg_b, bhn_b = bwd
    H = wh_f.shape[0]
    n_in = len(xs)
    assert len(wi_f) == n_in and len(wi_b) == n_in
    TB = B if B <= batch_tile else batch_tile
    grid = (pl.cdiv(B, TB),)

    def const_spec(a):
        nd = a.ndim

        def imap(b):
            return (0,) * nd

        return pl.BlockSpec(a.shape, imap)

    x_specs = [pl.BlockSpec((T, TB, int(x.shape[-1])), lambda b: (0, b, 0)) for x in xs]
    in_specs = (x_specs
                + [pl.BlockSpec((TB, 1), lambda b: (b, 0))]
                + [const_spec(a) for a in list(wi_f) + [wh_f, bg_f, bhn_f]]
                + [const_spec(a) for a in list(wi_b) + [wh_b, bg_b, bhn_b]])
    inputs = (list(xs) + [lengths_b1]
              + list(wi_f) + [wh_f, bg_f, bhn_f]
              + list(wi_b) + [wh_b, bg_b, bhn_b])

    if last_layer:
        out_shape = jax.ShapeDtypeStruct((T, B, H), jnp.float32)
        out_specs = pl.BlockSpec((T, TB, H), lambda b: (0, b, 0))
    else:
        out_shape = (jax.ShapeDtypeStruct((T, B, H), jnp.float32),
                     jax.ShapeDtypeStruct((T, B, H), jnp.float32))
        out_specs = (pl.BlockSpec((T, TB, H), lambda b: (0, b, 0)),
                     pl.BlockSpec((T, TB, H), lambda b: (0, b, 0)))

    kernel = functools.partial(_bigru_layer_kernel, n_in=n_in, seq_len=T,
                               hidden=H, last_layer=last_layer)
    return pl.pallas_call(
        kernel,
        out_shape=out_shape,
        grid=grid,
        in_specs=in_specs,
        out_specs=out_specs,
        scratch_shapes=[
            pltpu.VMEM((T, TB, 3 * H), jnp.float32),   # gi fwd (never round-trips HBM)
            pltpu.VMEM((T, TB, 3 * H), jnp.float32),   # gi bwd
            pltpu.VMEM((TB, H), jnp.float32),          # h fwd
            pltpu.VMEM((TB, H), jnp.float32),          # h bwd
        ],
        compiler_params=pltpu.CompilerParams(
            dimension_semantics=("parallel",),
            vmem_limit_bytes=_VMEM_LIMIT_BYTES),
    )(*inputs)


# ------------------- masked attention pooling (linear -> softmax -> sum -> l2norm) -------------------
def _attn_pool_kernel(cap_ref, len_ref, w_ref, b_ref, out_ref, *, l2_normalize):
    # cap_ref: (TB, T, E)  len_ref: (TB, 1, 1) int32  w_ref: (E, E) x@W layout  b_ref: (1, E)
    cap = cap_ref[...]
    TB, T, E = cap.shape
    ext = jnp.dot(cap.reshape(TB * T, E), w_ref[...],
                  preferred_element_type=jnp.float32) + b_ref[...]
    ext = ext.reshape(TB, T, E)
    t_ids = lax.broadcasted_iota(jnp.int32, (TB, T, 1), 1)
    mask = t_ids < len_ref[...]
    ext = jnp.where(mask, ext, -10000.0)                    # masked_fill(mask==0, -10000)
    m = jnp.max(ext, axis=1, keepdims=True)                 # torch.max(dim=1)
    e = jnp.exp(ext - m)                                    # Softmax(dim=1)
    attn = e / jnp.sum(e, axis=1, keepdims=True)            # (exact; pl.reciprocal(approx) optional)
    attn = jnp.where(mask, attn, 0.0)                       # masked_fill(mask==0, 0)
    feat = jnp.sum(attn * cap, axis=1)                      # (TB, E)
    if l2_normalize:
        norm = jnp.sqrt(jnp.sum(feat * feat, axis=-1, keepdims=True)) + 1e-8
        feat = feat / norm
    out_ref[...] = feat


def attn_pool(cap_emb, lengths_b11, wT, b_row, *, l2_normalize=True, batch_tile=128):
    B, T, E = cap_emb.shape
    TB = B if B <= batch_tile else batch_tile
    grid = (pl.cdiv(B, TB),)
    kernel = functools.partial(_attn_pool_kernel, l2_normalize=l2_normalize)
    return pl.pallas_call(
        kernel,
        out_shape=jax.ShapeDtypeStruct((B, E), jnp.float32),
        grid=grid,
        in_specs=[
            pl.BlockSpec((TB, T, E), lambda b: (b, 0, 0)),
            pl.BlockSpec((TB, 1, 1), lambda b: (b, 0, 0)),
            pl.BlockSpec((E, E), lambda b: (0, 0)),
            pl.BlockSpec((1, E), lambda b: (0, 0)),
        ],
        out_specs=pl.BlockSpec((TB, E), lambda b: (b, 0)),
        compiler_params=pltpu.CompilerParams(
            dimension_semantics=("parallel",),
            vmem_limit_bytes=_VMEM_LIMIT_BYTES),
    )(cap_emb, lengths_b11, wT, b_row)


# --------------------------------- module wrappers ---------------------------------
def encoder_text_forward(x_ids, lengths, params, *, no_txtnorm=False, batch_tile=128):
    """Default EncoderText.forward path. Requires x_ids.shape[1] == max(lengths)."""
    emb = params["embedding"][x_ids].astype(jnp.float32)     # (B, T, D) gather (XLA glue)
    B, T, _ = emb.shape
    len_b1 = lengths.reshape(B, 1).astype(jnp.int32)
    xs = [jnp.transpose(emb, (1, 0, 2))]                     # time-major (T, B, D)
    n_layers = len(params["gru_layers"])
    cap_tm = None
    for li, layer in enumerate(params["gru_layers"]):
        if li == n_layers - 1:
            cap_tm = bigru_layer(xs, len_b1, layer["fwd"], layer["bwd"],
                                 last_layer=True, batch_tile=batch_tile)
        else:
            out_f, out_b = bigru_layer(xs, len_b1, layer["fwd"], layer["bwd"],
                                       last_layer=False, batch_tile=batch_tile)
            xs = [out_f, out_b]                              # next-layer input, no concat
    cap_emb = jnp.transpose(cap_tm, (1, 0, 2))               # (B, T, E) module contract
    len_b11 = lengths.reshape(B, 1, 1).astype(jnp.int32)
    feat = attn_pool(cap_emb, len_b11, params["linear1_wT"], params["linear1_b"],
                     l2_normalize=not no_txtnorm, batch_tile=batch_tile)
    return feat, cap_emb


def encoder_text_gpool2(cap_emb, lengths, params, *, no_txtnorm=False, batch_tile=128):
    """gpool2=True path: pool an externally supplied cap_emb with linear2."""
    B = cap_emb.shape[0]
    len_b11 = lengths.reshape(B, 1, 1).astype(jnp.int32)
    return attn_pool(cap_emb.astype(jnp.float32), len_b11,
                     params["linear2_wT"], params["linear2_b"],
                     l2_normalize=not no_txtnorm, batch_tile=batch_tile)


# ------------------------------ deterministic parameter init ------------------------------
def _dir_kernel_params(raw, n_in, H):
    """torch layout (w_ih (3H,Din), w_hh (3H,H), b_ih, b_hh) -> fused x@W kernel layout."""
    w_ih, w_hh, b_ih, b_hh = raw
    wi = jnp.transpose(w_ih)                       # (D_in, 3H), gate order [r|z|n]
    d_in = wi.shape[0]
    if n_in == 1:
        wi_list = (wi,)
    else:                                          # split for [out_fwd, out_bwd] inputs
        part = d_in // n_in
        wi_list = tuple(wi[j * part:(j + 1) * part, :] for j in range(n_in))
    wh = jnp.transpose(w_hh)                       # (H, 3H)
    bias_gi = jnp.concatenate([b_ih[:H] + b_hh[:H],
                               b_ih[H:2 * H] + b_hh[H:2 * H],
                               b_ih[2 * H:]]).reshape(1, 3 * H)
    bias_hn = b_hh[2 * H:].reshape(1, H)           # added to gh_n inside the recurrence
    return (wi_list, wh, bias_gi, bias_hn)


# TODO(synk): GloVe/vocab-json loading in init_weights has no in-kernel equivalent;
#             the embedding table is initialized randomly instead.
def init_params(key, vocab_size, word_dim, embed_size, num_layers, use_bi_gru=True):
    H = embed_size
    keys = iter(jax.random.split(key, 1 + 8 * num_layers + 4))

    def uni(shape, k):
        return jax.random.uniform(next(keys), shape, jnp.float32, -k, k)

    params = {"embedding": jax.random.normal(next(keys), (vocab_size, word_dim), jnp.float32)}

    kg = H ** -0.5
    layers = []
    for layer in range(num_layers):
        d_in = word_dim if layer == 0 else (2 * H if use_bi_gru else H)
        n_in = 1 if layer == 0 else (2 if use_bi_gru else 1)

        def make_dir():
            w_ih = uni((3 * H, d_in), kg)          # torch GRU weight_ih (3H, d_in)
            w_hh = uni((3 * H, H), kg)             # torch GRU weight_hh (3H, H)
            b_ih = uni((3 * H,), kg)
            b_hh = uni((3 * H,), kg)
            return (w_ih, w_hh, b_ih, b_hh)

        fwd_raw = make_dir()
        bwd_raw = make_dir()
        layers.append({
            "fwd_raw": fwd_raw, "bwd_raw": bwd_raw,
            "fwd": _dir_kernel_params(fwd_raw, n_in, H),
            "bwd": _dir_kernel_params(bwd_raw, n_in, H),
        })
    params["gru_layers"] = layers

    kl = embed_size ** -0.5
    w1 = uni((embed_size, embed_size), kl)         # torch Linear weight (out, in)
    b1 = uni((embed_size,), kl)
    w2 = uni((embed_size, embed_size), kl)
    b2 = uni((embed_size,), kl)
    params["linear1_wT"] = w1.T
    params["linear1_b"] = b1.reshape(1, embed_size)
    params["linear2_wT"] = w2.T
    params["linear2_b"] = b2.reshape(1, embed_size)
    return params


# ------------------------------ pure-JAX reference (torch math) ------------------------------
def _gru_dir_ref(x_btd, lengths, w_ih, w_hh, b_ih, b_hh, reverse):
    B, T, _ = x_btd.shape
    H = w_hh.shape[1]
    wi = w_ih.T
    wh = w_hh.T
    ts = jnp.arange(T)
    if reverse:
        ts = ts[::-1]

    def step(h, t):
        x_t = x_btd[:, t, :]
        gi = x_t @ wi + b_ih
        gh = h @ wh + b_hh
        r = jax.nn.sigmoid(gi[:, :H] + gh[:, :H])
        z = jax.nn.sigmoid(gi[:, H:2 * H] + gh[:, H:2 * H])
        n = jnp.tanh(gi[:, 2 * H:] + r * gh[:, 2 * H:])
        h_new = (1.0 - z) * n + z * h
        valid = (lengths > t)[:, None]
        h_next = jnp.where(valid, h_new, h)
        return h_next, jnp.where(valid, h_next, 0.0)

    _, outs = lax.scan(step, jnp.zeros((B, H), jnp.float32), ts)
    if reverse:
        outs = outs[::-1]
    return jnp.transpose(outs, (1, 0, 2))                     # (B, T, H)


def encoder_text_forward_ref(x_ids, lengths, params, *, no_txtnorm=False):
    emb = params["embedding"][x_ids].astype(jnp.float32)
    x = emb
    for layer in params["gru_layers"]:
        out_f = _gru_dir_ref(x, lengths, *layer["fwd_raw"], reverse=False)
        out_b = _gru_dir_ref(x, lengths, *layer["bwd_raw"], reverse=True)
        x = jnp.concatenate([out_f, out_b], axis=-1)
    cap_emb = (out_f + out_b) * 0.5
    B, T, E = cap_emb.shape
    ext = cap_emb @ params["linear1_wT"] + params["linear1_b"]
    mask = jnp.arange(T)[None, :, None] < lengths[:, None, None]
    ext = jnp.where(mask, ext, -10000.0)
    m = jnp.max(ext, axis=1, keepdims=True)
    e = jnp.exp(ext - m)
    attn = e / jnp.sum(e, axis=1, keepdims=True)
    attn = jnp.where(mask, attn, 0.0)
    feat = jnp.sum(attn * cap_emb, axis=1)
    if not no_txtnorm:
        norm = jnp.sqrt(jnp.sum(feat * feat, axis=-1, keepdims=True)) + 1e-8
        feat = feat / norm
    return feat, cap_emb


if __name__ == "__main__":
    import numpy as np

    vocab_size, word_dim, embed_size = 50, 32, 32
    B, T = 2, 8

    key = jax.random.PRNGKey(0)
    k_param, k_ids, k_param2 = jax.random.split(key, 3)

    x_ids = jax.random.randint(k_ids, (B, T), 0, vocab_size, dtype=jnp.int32)
    lengths = jnp.array([T, 5], dtype=jnp.int32)              # T == max(lengths)

    # --- num_layers = 1 (default EncoderText config) ---
    params = init_params(k_param, vocab_size, word_dim, embed_size, num_layers=1)
    feat, cap_embs = encoder_text_forward(x_ids, lengths, params)
    feat = jax.block_until_ready(feat)
    cap_embs = jax.block_until_ready(cap_embs)

    feat_ref, cap_ref = encoder_text_forward_ref(x_ids, lengths, params)
    np.testing.assert_allclose(np.asarray(feat), np.asarray(feat_ref), atol=1e-4, rtol=1e-4)
    np.testing.assert_allclose(np.asarray(cap_embs), np.asarray(cap_ref), atol=1e-4, rtol=1e-4)

    # gpool2 branch (same pooling kernel, linear2 weights)
    feat_g2 = jax.block_until_ready(encoder_text_gpool2(cap_embs, lengths, params))
    assert feat_g2.shape == (B, embed_size)

    # --- num_layers = 2 exercises the mid-layer kernel (split fwd/bwd inputs, no concat) ---
    params2 = init_params(k_param2, vocab_size, word_dim, embed_size, num_layers=2)
    feat2, cap2 = encoder_text_forward(x_ids, lengths, params2)
    feat2 = jax.block_until_ready(feat2)
    feat2_ref, cap2_ref = encoder_text_forward_ref(x_ids, lengths, params2)
    np.testing.assert_allclose(np.asarray(feat2), np.asarray(feat2_ref), atol=1e-4, rtol=1e-4)
    np.testing.assert_allclose(np.asarray(cap2), np.asarray(cap2_ref), atol=1e-4, rtol=1e-4)

    assert feat.shape == (B, embed_size)
    assert cap_embs.shape == (B, T, embed_size)
    print("KERNEL_OK")
</pallas_src>

<mosaic_0001>
module attributes {stable_mosaic.version = 11 : i64} {
  func.func @_bigru_layer_kernel(%arg0: i32, %arg1: memref<8x2x32xf32, #tpu.memory_space<vmem>>, %arg2: memref<2x1xi32, #tpu.memory_space<vmem>>, %arg3: memref<32x96xf32, #tpu.memory_space<vmem>>, %arg4: memref<32x96xf32, #tpu.memory_space<vmem>>, %arg5: memref<1x96xf32, #tpu.memory_space<vmem>>, %arg6: memref<1x32xf32, #tpu.memory_space<vmem>>, %arg7: memref<32x96xf32, #tpu.memory_space<vmem>>, %arg8: memref<32x96xf32, #tpu.memory_space<vmem>>, %arg9: memref<1x96xf32, #tpu.memory_space<vmem>>, %arg10: memref<1x32xf32, #tpu.memory_space<vmem>>, %arg11: memref<8x2x32xf32, #tpu.memory_space<vmem>>, %arg12: memref<8x2x96xf32, #tpu.memory_space<vmem>>, %arg13: memref<8x2x96xf32, #tpu.memory_space<vmem>>, %arg14: memref<2x32xf32, #tpu.memory_space<vmem>>, %arg15: memref<2x32xf32, #tpu.memory_space<vmem>>) attributes {dimension_semantics = [#tpu.dimension_semantics<parallel>], iteration_bounds = array<i64: 1>, scalar_prefetch = 0 : i64, scratch_operands = 4 : i64, tpu.core_type = #tpu.core_type<tc>, window_params = [{transform_indices = @transform_0, window_bounds = array<i64: 8, 2, 32>}, {transform_indices = @transform_1, window_bounds = array<i64: 2, 1>}, {pipeline_mode = #tpu.pipeline_mode<synchronous>, transform_indices = @transform_2, window_bounds = array<i64: 32, 96>}, {pipeline_mode = #tpu.pipeline_mode<synchronous>, transform_indices = @transform_3, window_bounds = array<i64: 32, 96>}, {pipeline_mode = #tpu.pipeline_mode<synchronous>, transform_indices = @transform_4, window_bounds = array<i64: 1, 96>}, {pipeline_mode = #tpu.pipeline_mode<synchronous>, transform_indices = @transform_5, window_bounds = array<i64: 1, 32>}, {pipeline_mode = #tpu.pipeline_mode<synchronous>, transform_indices = @transform_6, window_bounds = array<i64: 32, 96>}, {pipeline_mode = #tpu.pipeline_mode<synchronous>, transform_indices = @transform_7, window_bounds = array<i64: 32, 96>}, {pipeline_mode = #tpu.pipeline_mode<synchronous>, transform_indices = @transform_8, window_bounds = array<i64: 1, 96>}, {pipeline_mode = #tpu.pipeline_mode<synchronous>, transform_indices = @transform_9, window_bounds = array<i64: 1, 32>}, {transform_indices = @transform_10, window_bounds = array<i64: 8, 2, 32>}]} {
    %c0 = arith.constant 0 : index
    %c0_0 = arith.constant 0 : index
    %c0_1 = arith.constant 0 : index
    %0 = vector.load %arg1[%c0, %c0_0, %c0_1] : memref<8x2x32xf32, #tpu.memory_space<vmem>>, vector<8x2x32xf32>
    %1 = vector.shape_cast %0 : vector<8x2x32xf32> to vector<16x32xf32>
    %c0_2 = arith.constant 0 : index
    %c0_3 = arith.constant 0 : index
    %2 = vector.load %arg3[%c0_2, %c0_3] : memref<32x96xf32, #tpu.memory_space<vmem>>, vector<32x96xf32>
    %cst = arith.constant dense<0.000000e+00> : vector<16x96xf32>
    %3 = tpu.matmul %1, %2, %cst {dimension_numbers = #tpu.dot_dimension_numbers<[1], [0], [0], [1], [0, 0, 1, 1], [], []>} : vector<16x32xf32>, vector<32x96xf32>, vector<16x96xf32> -> vector<16x96xf32>
    %c0_4 = arith.constant 0 : index
    %c0_5 = arith.constant 0 : index
    %4 = vector.load %arg5[%c0_4, %c0_5] : memref<1x96xf32, #tpu.memory_space<vmem>>, vector<1x96xf32>
    %5 = vector.broadcast %4 : vector<1x96xf32> to vector<16x96xf32>
    %6 = arith.addf %3, %5 : vector<16x96xf32>
    %7 = vector.shape_cast %6 : vector<16x96xf32> to vector<8x2x96xf32>
    %c0_6 = arith.constant 0 : index
    %c0_7 = arith.constant 0 : index
    %c0_8 = arith.constant 0 : index
    %8 = vector.load %arg12[%c0_6, %c0_7, %c0_8] : memref<8x2x96xf32, #tpu.memory_space<vmem>>, vector<8x2x96xf32>
    tpu.vector_store %arg12[%c0_6, %c0_7, %c0_8], %7 {strides = array<i32>} : memref<8x2x96xf32, #tpu.memory_space<vmem>>, vector<8x2x96xf32>,
    %c0_9 = arith.constant 0 : index
    %c0_10 = arith.constant 0 : index
    %c0_11 = arith.constant 0 : index
    %9 = vector.load %arg1[%c0_9, %c0_10, %c0_11] : memref<8x2x32xf32, #tpu.memory_space<vmem>>, vector<8x2x32xf32>
    %10 = vector.shape_cast %9 : vector<8x2x32xf32> to vector<16x32xf32>
    %c0_12 = arith.constant 0 : index
    %c0_13 = arith.constant 0 : index
    %11 = vector.load %arg7[%c0_12, %c0_13] : memref<32x96xf32, #tpu.memory_space<vmem>>, vector<32x96xf32>
    %cst_14 = arith.constant dense<0.000000e+00> : vector<16x96xf32>
    %12 = tpu.matmul %10, %11, %cst_14 {dimension_numbers = #tpu.dot_dimension_numbers<[1], [0], [0], [1], [0, 0, 1, 1], [], []>} : vector<16x32xf32>, vector<32x96xf32>, vector<16x96xf32> -> vector<16x96xf32>
    %c0_15 = arith.constant 0 : index
    %c0_16 = arith.constant 0 : index
    %13 = vector.load %arg9[%c0_15, %c0_16] : memref<1x96xf32, #tpu.memory_space<vmem>>, vector<1x96xf32>
    %14 = vector.broadcast %13 : vector<1x96xf32> to vector<16x96xf32>
    %15 = arith.addf %12, %14 : vector<16x96xf32>
    %16 = vector.shape_cast %15 : vector<16x96xf32> to vector<8x2x96xf32>
    %c0_17 = arith.constant 0 : index
    %c0_18 = arith.constant 0 : index
    %c0_19 = arith.constant 0 : index
    %17 = vector.load %arg13[%c0_17, %c0_18, %c0_19] : memref<8x2x96xf32, #tpu.memory_space<vmem>>, vector<8x2x96xf32>
    tpu.vector_store %arg13[%c0_17, %c0_18, %c0_19], %16 {strides = array<i32>} : memref<8x2x96xf32, #tpu.memory_space<vmem>>, vector<8x2x96xf32>,
    %cst_20 = arith.constant 0.000000e+00 : f32
    %18 = vector.broadcast %cst_20 : f32 to vector<2x32xf32>
    %c0_21 = arith.constant 0 : index
    %c0_22 = arith.constant 0 : index
    %19 = vector.load %arg14[%c0_21, %c0_22] : memref<2x32xf32, #tpu.memory_space<vmem>>, vector<2x32xf32>
    tpu.vector_store %arg14[%c0_21, %c0_22], %18 {strides = array<i32>} : memref<2x32xf32, #tpu.memory_space<vmem>>, vector<2x32xf32>,
    %cst_23 = arith.constant 0.000000e+00 : f32
    %20 = vector.broadcast %cst_23 : f32 to vector<2x32xf32>
    %c0_24 = arith.constant 0 : index
    %c0_25 = arith.constant 0 : index
    %21 = vector.load %arg15[%c0_24, %c0_25] : memref<2x32xf32, #tpu.memory_space<vmem>>, vector<2x32xf32>
    tpu.vector_store %arg15[%c0_24, %c0_25], %20 {strides = array<i32>} : memref<2x32xf32, #tpu.memory_space<vmem>>, vector<2x32xf32>,
    %cst_26 = arith.constant 0.000000e+00 : f32
    %22 = vector.broadcast %cst_26 : f32 to vector<8x2x32xf32>
    %c0_27 = arith.constant 0 : index
    %c0_28 = arith.constant 0 : index
    %c0_29 = arith.constant 0 : index
    %23 = vector.load %arg11[%c0_27, %c0_28, %c0_29] : memref<8x2x32xf32, #tpu.memory_space<vmem>>, vector<8x2x32xf32>
    tpu.vector_store %arg11[%c0_27, %c0_28, %c0_29], %22 {strides = array<i32>} : memref<8x2x32xf32, #tpu.memory_space<vmem>>, vector<8x2x32xf32>,
    %c0_30 = arith.constant 0 : index
    %c0_31 = arith.constant 0 : index
    %24 = vector.load %arg2[%c0_30, %c0_31] : memref<2x1xi32, #tpu.memory_space<vmem>>, vector<2x1xi32>
    %c0_32 = arith.constant 0 : index
    %c0_33 = arith.constant 0 : index
    %25 = vector.load %arg4[%c0_32, %c0_33] : memref<32x96xf32, #tpu.memory_space<vmem>>, vector<32x96xf32>
    %c0_34 = arith.constant 0 : index
    %c0_35 = arith.constant 0 : index
    %26 = vector.load %arg8[%c0_34, %c0_35] : memref<32x96xf32, #tpu.memory_space<vmem>>, vector<32x96xf32>
    %c0_36 = arith.constant 0 : index
    %c0_37 = arith.constant 0 : index
    %27 = vector.load %arg6[%c0_36, %c0_37] : memref<1x32xf32, #tpu.memory_space<vmem>>, vector<1x32xf32>
    %28 = vector.shape_cast %27 : vector<1x32xf32> to vector<1x32xf32>
    %29 = vector.broadcast %28 : vector<1x32xf32> to vector<2x32xf32>
    %c0_38 = arith.constant 0 : index
    %c0_39 = arith.constant 0 : index
    %30 = vector.load %arg10[%c0_38, %c0_39] : memref<1x32xf32, #tpu.memory_space<vmem>>, vector<1x32xf32>
    %31 = vector.shape_cast %30 : vector<1x32xf32> to vector<1x32xf32>
    %32 = vector.broadcast %31 : vector<1x32xf32> to vector<2x32xf32>
    %c0_i32 = arith.constant 0 : i32
    %c8_i32 = arith.constant 8 : i32
    %33 = arith.addi %c0_i32, %c8_i32 : i32
    %c1_i32 = arith.constant 1 : i32
    scf.for %arg16 = %c0_i32 to %33 step %c1_i32  : i32 {
      %c1_i32_41 = arith.constant 1 : i32
      %34 = arith.muli %arg16, %c1_i32_41 : i32
      %c0_i32_42 = arith.constant 0 : i32
      %35 = arith.addi %c0_i32_42, %34 : i32
      %c7_i32 = arith.constant 7 : i32
      %36 = arith.subi %c7_i32, %35 : i32
      %c0_43 = arith.constant 0 : index
      %c0_44 = arith.constant 0 : index
      %37 = vector.load %arg14[%c0_43, %c0_44] : memref<2x32xf32, #tpu.memory_space<vmem>>, vector<2x32xf32>
      %38 = arith.index_cast %35 : i32 to index
      %c0_45 = arith.constant 0 : index
      %c0_46 = arith.constant 0 : index
      %39 = vector.load %arg12[%38, %c0_45, %c0_46] : memref<8x2x96xf32, #tpu.memory_space<vmem>>, vector<1x2x96xf32>
      %40 = vector.shape_cast %39 : vector<1x2x96xf32> to vector<2x96xf32>
      %cst_47 = arith.constant dense<0.000000e+00> : vector<2x96xf32>
      %41 = tpu.matmul %37, %25, %cst_47 {dimension_numbers = #tpu.dot_dimension_numbers<[1], [0], [0], [1], [0, 0, 1, 1], [], []>} : vector<2x32xf32>, vector<32x96xf32>, vector<2x96xf32> -> vector<2x96xf32>
      %42 = vector.extract_strided_slice %40 {offsets = [0, 0], sizes = [2, 32], strides = [1, 1]} : vector<2x96xf32> to vector<2x32xf32>
      %43 = vector.extract_strided_slice %41 {offsets = [0, 0], sizes = [2, 32], strides = [1, 1]} : vector<2x96xf32> to vector<2x32xf32>
      %44 = arith.addf %42, %43 : vector<2x32xf32>
      %45 = arith.negf %44 : vector<2x32xf32>
      %46 = math.exp %45 : vector<2x32xf32>
      %cst_48 = arith.constant 1.000000e+00 : f32
      %47 = vector.broadcast %cst_48 : f32 to vector<2x32xf32>
      %48 = arith.addf %47, %46 : vector<2x32xf32>
      %49 = arith.divf %47, %48 : vector<2x32xf32>
      %50 = vector.extract_strided_slice %40 {offsets = [0, 32], sizes = [2, 32], strides = [1, 1]} : vector<2x96xf32> to vector<2x32xf32>
      %51 = vector.extract_strided_slice %41 {offsets = [0, 32], sizes = [2, 32], strides = [1, 1]} : vector<2x96xf32> to vector<2x32xf32>
      %52 = arith.addf %50, %51 : vector<2x32xf32>
      %53 = arith.negf %52 : vector<2x32xf32>
      %54 = math.exp %53 : vector<2x32xf32>
      %cst_49 = arith.constant 1.000000e+00 : f32
      %55 = vector.broadcast %cst_49 : f32 to vector<2x32xf32>
      %56 = arith.addf %55, %54 : vector<2x32xf32>
      %57 = arith.divf %55, %56 : vector<2x32xf32>
      %58 = vector.extract_strided_slice %40 {offsets = [0, 64], sizes = [2, 32], strides = [1, 1]} : vector<2x96xf32> to vector<2x32xf32>
      %59 = vector.extract_strided_slice %41 {offsets = [0, 64], sizes = [2, 32], strides = [1, 1]} : vector<2x96xf32> to vector<2x32xf32>
      %60 = arith.addf %59, %29 : vector<2x32xf32>
      %61 = arith.mulf %49, %60 : vector<2x32xf32>
      %62 = arith.addf %58, %61 : vector<2x32xf32>
      %63 = math.tanh %62 : vector<2x32xf32>
      %cst_50 = arith.constant 1.000000e+00 : f32
      %64 = vector.broadcast %cst_50 : f32 to vector<2x32xf32>
      %65 = arith.subf %64, %57 : vector<2x32xf32>
      %66 = arith.mulf %65, %63 : vector<2x32xf32>
      %67 = arith.mulf %57, %37 : vector<2x32xf32>
      %68 = arith.addf %66, %67 : vector<2x32xf32>
      %69 = vector.broadcast %35 : i32 to vector<2x1xi32>
      %70 = arith.cmpi sgt, %24, %69 : vector<2x1xi32>
      %71 = vector.shape_cast %70 : vector<2x1xi1> to vector<2x1xi1>
      %72 = vector.broadcast %71 : vector<2x1xi1> to vector<2x32xi1>
      %73 = arith.select %72, %68, %37 : vector<2x32xi1>, vector<2x32xf32>
      %c0_51 = arith.constant 0 : index
      %c0_52 = arith.constant 0 : index
      %74 = vector.load %arg14[%c0_51, %c0_52] : memref<2x32xf32, #tpu.memory_space<vmem>>, vector<2x32xf32>
      tpu.vector_store %arg14[%c0_51, %c0_52], %73 {strides = array<i32>} : memref<2x32xf32, #tpu.memory_space<vmem>>, vector<2x32xf32>,
      %cst_53 = arith.constant 0.000000e+00 : f32
      %75 = vector.shape_cast %70 : vector<2x1xi1> to vector<2x1xi1>
      %76 = vector.broadcast %75 : vector<2x1xi1> to vector<2x32xi1>
      %77 = vector.broadcast %cst_53 : f32 to vector<2x32xf32>
      %78 = arith.select %76, %73, %77 : vector<2x32xi1>, vector<2x32xf32>
      %c0_54 = arith.constant 0 : index
      %c0_55 = arith.constant 0 : index
      %79 = vector.load %arg15[%c0_54, %c0_55] : memref<2x32xf32, #tpu.memory_space<vmem>>, vector<2x32xf32>
      %80 = arith.index_cast %36 : i32 to index
      %c0_56 = arith.constant 0 : index
      %c0_57 = arith.constant 0 : index
      %81 = vector.load %arg13[%80, %c0_56, %c0_57] : memref<8x2x96xf32, #tpu.memory_space<vmem>>, vector<1x2x96xf32>
      %82 = vector.shape_cast %81 : vector<1x2x96xf32> to vector<2x96xf32>
      %cst_58 = arith.constant dense<0.000000e+00> : vector<2x96xf32>
      %83 = tpu.matmul %79, %26, %cst_58 {dimension_numbers = #tpu.dot_dimension_numbers<[1], [0], [0], [1], [0, 0, 1, 1], [], []>} : vector<2x32xf32>, vector<32x96xf32>, vector<2x96xf32> -> vector<2x96xf32>
      %84 = vector.extract_strided_slice %82 {offsets = [0, 0], sizes = [2, 32], strides = [1, 1]} : vector<2x96xf32> to vector<2x32xf32>
      %85 = vector.extract_strided_slice %83 {offsets = [0, 0], sizes = [2, 32], strides = [1, 1]} : vector<2x96xf32> to vector<2x32xf32>
      %86 = arith.addf %84, %85 : vector<2x32xf32>
      %87 = arith.negf %86 : vector<2x32xf32>
      %88 = math.exp %87 : vector<2x32xf32>
      %cst_59 = arith.constant 1.000000e+00 : f32
      %89 = vector.broadcast %cst_59 : f32 to vector<2x32xf32>
      %90 = arith.addf %89, %88 : vector<2x32xf32>
      %91 = arith.divf %89, %90 : vector<2x32xf32>
      %92 = vector.extract_strided_slice %82 {offsets = [0, 32], sizes = [2, 32], strides = [1, 1]} : vector<2x96xf32> to vector<2x32xf32>
      %93 = vector.extract_strided_slice %83 {offsets = [0, 32], sizes = [2, 32], strides = [1, 1]} : vector<2x96xf32> to vector<2x32xf32>
      %94 = arith.addf %92, %93 : vector<2x32xf32>
      %95 = arith.negf %94 : vector<2x32xf32>
      %96 = math.exp %95 : vector<2x32xf32>
      %cst_60 = arith.constant 1.000000e+00 : f32
      %97 = vector.broadcast %cst_60 : f32 to vector<2x32xf32>
      %98 = arith.addf %97, %96 : vector<2x32xf32>
      %99 = arith.divf %97, %98 : vector<2x32xf32>
      %100 = vector.extract_strided_slice %82 {offsets = [0, 64], sizes = [2, 32], strides = [1, 1]} : vector<2x96xf32> to vector<2x32xf32>
      %101 = vector.extract_strided_slice %83 {offsets = [0, 64], sizes = [2, 32], strides = [1, 1]} : vector<2x96xf32> to vector<2x32xf32>
      %102 = arith.addf %101, %32 : vector<2x32xf32>
      %103 = arith.mulf %91, %102 : vector<2x32xf32>
      %104 = arith.addf %100, %103 : vector<2x32xf32>
      %105 = math.tanh %104 : vector<2x32xf32>
      %cst_61 = arith.constant 1.000000e+00 : f32
      %106 = vector.broadcast %cst_61 : f32 to vector<2x32xf32>
      %107 = arith.subf %106, %99 : vector<2x32xf32>
      %108 = arith.mulf %107, %105 : vector<2x32xf32>
      %109 = arith.mulf %99, %79 : vector<2x32xf32>
      %110 = arith.addf %108, %109 : vector<2x32xf32>
      %111 = vector.broadcast %36 : i32 to vector<2x1xi32>
      %112 = arith.cmpi sgt, %24, %111 : vector<2x1xi32>
      %113 = vector.shape_cast %112 : vector<2x1xi1> to vector<2x1xi1>
      %114 = vector.broadcast %113 : vector<2x1xi1> to vector<2x32xi1>
      %115 = arith.select %114, %110, %79 : vector<2x32xi1>, vector<2x32xf32>
      %c0_62 = arith.constant 0 : index
      %c0_63 = arith.constant 0 : index
      %116 = vector.load %arg15[%c0_62, %c0_63] : memref<2x32xf32, #tpu.memory_space<vmem>>, vector<2x32xf32>
      tpu.vector_store %arg15[%c0_62, %c0_63], %115 {strides = array<i32>} : memref<2x32xf32, #tpu.memory_space<vmem>>, vector<2x32xf32>,
      %cst_64 = arith.constant 0.000000e+00 : f32
      %117 = vector.shape_cast %112 : vector<2x1xi1> to vector<2x1xi1>
      %118 = vector.broadcast %117 : vector<2x1xi1> to vector<2x32xi1>
      %119 = vector.broadcast %cst_64 : f32 to vector<2x32xf32>
      %120 = arith.select %118, %115, %119 : vector<2x32xi1>, vector<2x32xf32>
      %121 = arith.index_cast %35 : i32 to index
      %c0_65 = arith.constant 0 : index
      %c0_66 = arith.constant 0 : index
      %122 = vector.load %arg11[%121, %c0_65, %c0_66] : memref<8x2x32xf32, #tpu.memory_space<vmem>>, vector<1x2x32xf32>
      %123 = vector.shape_cast %122 : vector<1x2x32xf32> to vector<2x32xf32>
      %cst_67 = arith.constant 5.000000e-01 : f32
      %124 = vector.broadcast %cst_67 : f32 to vector<2x32xf32>
      %125 = arith.mulf %124, %78 : vector<2x32xf32>
      %126 = arith.addf %123, %125 : vector<2x32xf32>
      %127 = arith.index_cast %35 : i32 to index
      %c0_68 = arith.constant 0 : index
      %c0_69 = arith.constant 0 : index
      %128 = vector.load %arg11[%127, %c0_68, %c0_69] : memref<8x2x32xf32, #tpu.memory_space<vmem>>, vector<1x2x32xf32>
      %129 = vector.shape_cast %128 : vector<1x2x32xf32> to vector<2x32xf32>
      %130 = vector.shape_cast %126 : vector<2x32xf32> to vector<1x2x32xf32>
      tpu.vector_store %arg11[%127, %c0_68, %c0_69], %130 {strides = array<i32>} : memref<8x2x32xf32, #tpu.memory_space<vmem>>, vector<1x2x32xf32>,
      %131 = arith.index_cast %36 : i32 to index
      %c0_70 = arith.constant 0 : index
      %c0_71 = arith.constant 0 : index
      %132 = vector.load %arg11[%131, %c0_70, %c0_71] : memref<8x2x32xf32, #tpu.memory_space<vmem>>, vector<1x2x32xf32>
      %133 = vector.shape_cast %132 : vector<1x2x32xf32> to vector<2x32xf32>
      %cst_72 = arith.constant 5.000000e-01 : f32
      %134 = vector.broadcast %cst_72 : f32 to vector<2x32xf32>
      %135 = arith.mulf %134, %120 : vector<2x32xf32>
      %136 = arith.addf %133, %135 : vector<2x32xf32>
      %137 = arith.index_cast %36 : i32 to index
      %c0_73 = arith.constant 0 : index
      %c0_74 = arith.constant 0 : index
      %138 = vector.load %arg11[%137, %c0_73, %c0_74] : memref<8x2x32xf32, #tpu.memory_space<vmem>>, vector<1x2x32xf32>
      %139 = vector.shape_cast %138 : vector<1x2x32xf32> to vector<2x32xf32>
      %140 = vector.shape_cast %136 : vector<2x32xf32> to vector<1x2x32xf32>
      tpu.vector_store %arg11[%137, %c0_73, %c0_74], %140 {strides = array<i32>} : memref<8x2x32xf32, #tpu.memory_space<vmem>>, vector<1x2x32xf32>,
    }
    %c8_i32_40 = arith.constant 8 : i32
    return
  }
  func.func @transform_0(%arg0: i32) -> (i32, i32, i32) {
    %c0_i32 = arith.constant 0 : i32
    %c0_i32_0 = arith.constant 0 : i32
    %c0_i32_1 = arith.constant 0 : i32
    return %c0_i32, %arg0, %c0_i32_0 : i32, i32, i32
  }
  func.func @transform_1(%arg0: i32) -> (i32, i32) {
    %c0_i32 = arith.constant 0 : i32
    %c0_i32_0 = arith.constant 0 : i32
    return %arg0, %c0_i32 : i32, i32
  }
  func.func @transform_2(%arg0: i32) -> (i32, i32) {
    %c0_i32 = arith.constant 0 : i32
    %c0_i32_0 = arith.constant 0 : i32
    %c0_i32_1 = arith.constant 0 : i32
    return %c0_i32, %c0_i32_0 : i32, i32
  }
  func.func @transform_3(%arg0: i32) -> (i32, i32) {
    %c0_i32 = arith.constant 0 : i32
    %c0_i32_0 = arith.constant 0 : i32
    %c0_i32_1 = arith.constant 0 : i32
    return %c0_i32, %c0_i32_0 : i32, i32
  }
  func.func @transform_4(%arg0: i32) -> (i32, i32) {
    %c0_i32 = arith.constant 0 : i32
    %c0_i32_0 = arith.constant 0 : i32
    %c0_i32_1 = arith.constant 0 : i32
    return %c0_i32, %c0_i32_0 : i32, i32
  }
  func.func @transform_5(%arg0: i32) -> (i32, i32) {
    %c0_i32 = arith.constant 0 : i32
    %c0_i32_0 = arith.constant 0 : i32
    %c0_i32_1 = arith.constant 0 : i32
    return %c0_i32, %c0_i32_0 : i32, i32
  }
  func.func @transform_6(%arg0: i32) -> (i32, i32) {
    %c0_i32 = arith.constant 0 : i32
    %c0_i32_0 = arith.constant 0 : i32
    %c0_i32_1 = arith.constant 0 : i32
    return %c0_i32, %c0_i32_0 : i32, i32
  }
  func.func @transform_7(%arg0: i32) -> (i32, i32) {
    %c0_i32 = arith.constant 0 : i32
    %c0_i32_0 = arith.constant 0 : i32
    %c0_i32_1 = arith.constant 0 : i32
    return %c0_i32, %c0_i32_0 : i32, i32
  }
  func.func @transform_8(%arg0: i32) -> (i32, i32) {
    %c0_i32 = arith.constant 0 : i32
    %c0_i32_0 = arith.constant 0 : i32
    %c0_i32_1 = arith.constant 0 : i32
    return %c0_i32, %c0_i32_0 : i32, i32
  }
  func.func @transform_9(%arg0: i32) -> (i32, i32) {
    %c0_i32 = arith.constant 0 : i32
    %c0_i32_0 = arith.constant 0 : i32
    %c0_i32_1 = arith.constant 0 : i32
    return %c0_i32, %c0_i32_0 : i32, i32
  }
  func.func @transform_10(%arg0: i32) -> (i32, i32, i32) {
    %c0_i32 = arith.constant 0 : i32
    %c0_i32_0 = arith.constant 0 : i32
    %c0_i32_1 = arith.constant 0 : i32
    return %c0_i32, %arg0, %c0_i32_0 : i32, i32, i32
  }
}

</mosaic_0001>

<llo_original>
// kernel: tpu_custom_call.1
$region0: #{tpu_custom_call.1}
  #allocation0 [shape = 'u32[]', space=smem, size = 0x4, offset = 0x4, fixed_abs, tag = 'smem constant byte address 0x4 - core index']
  #allocation1 [shape = 'u32[72,128]{1,0:T(1,128)}', space=vmem, size = 0x9000, scoped, tag = 'internal scratch']
  #allocation2 [shape = 'f32[8,2,96]{2,1,0:T(2,128)}', space=vmem, size = 0x2000, scoped, tag = 'scratch operand']
  #allocation3 [shape = 'f32[8,2,96]{2,1,0:T(2,128)}', space=vmem, size = 0x2000, scoped, tag = 'scratch operand']
  #allocation4 [shape = 'f32[2,32]{1,0:T(2,128)}', space=vmem, size = 0x400, scoped, tag = 'scratch operand']
  #allocation5 [shape = 'f32[2,32]{1,0:T(2,128)}', space=vmem, size = 0x400, scoped, tag = 'scratch operand']
  %s0 = inlined_call_operand.hbm [shape: f32[8,2,32], index: 0, kind: input, shape index: {}]
  %s1 = inlined_call_operand.vmem [shape: s32[2,1], index: 1, kind: input, shape index: {}]
  %s2 = inlined_call_operand.hbm [shape: f32[32,96], index: 2, kind: input, shape index: {}]
  %s3 = inlined_call_operand.hbm [shape: f32[32,96], index: 3, kind: input, shape index: {}]
  %s4 = inlined_call_operand.vmem [shape: f32[1,96], index: 4, kind: input, shape index: {}]
  %s5 = inlined_call_operand.vmem [shape: f32[1,32], index: 5, kind: input, shape index: {}]
  %s6 = inlined_call_operand.hbm [shape: f32[32,96], index: 6, kind: input, shape index: {}]
  %s7 = inlined_call_operand.hbm [shape: f32[32,96], index: 7, kind: input, shape index: {}]
  %s8 = inlined_call_operand.vmem [shape: f32[1,96], index: 8, kind: input, shape index: {}]
  %s9 = inlined_call_operand.vmem [shape: f32[1,32], index: 9, kind: input, shape index: {}]
  %s10 = inlined_call_operand.hbm [shape: f32[8,2,32], index: 10, kind: output, shape index: {}]
  %s11 = sld [smem:[#allocation0]]
  $region77: #{tpu_custom_call.1} parent=0
    _
  %s13 = ssub.s32 1, %s11
  %s14 = scalar_select 0, %s13, %s11
  $region1: #{tpu_custom_call.1} parent=0
    #allocation6 [shape = 'u8[8192]{0}', space=vmem, size = 0x2000, scoped, tag = 'input window, operand 0, single buffered']
    #allocation7 [shape = 's32[1]{0}', space=sflag, size = 0x4, scoped, tag = 'scoped memory for tpu_custom_call.1']
    #allocation8 [shape = 's32[1]{0}', space=sflag, size = 0x4, scoped, tag = 'scoped memory for tpu_custom_call.1']
    #allocation9 [shape = 'u8[16384]{0}', space=vmem, size = 0x4000, scoped, tag = 'input window, operand 2, single buffered']
    #allocation10 [shape = 's32[1]{0}', space=sflag, size = 0x4, scoped, tag = 'scoped memory for tpu_custom_call.1']
    #allocation11 [shape = 'u8[16384]{0}', space=vmem, size = 0x4000, scoped, tag = 'input window, operand 3, single buffered']
    #allocation12 [shape = 'u8[16384]{0}', space=vmem, size = 0x4000, scoped, tag = 'input window, operand 6, single buffered']
    #allocation13 [shape = 's32[1]{0}', space=sflag, size = 0x4, scoped, tag = 'scoped memory for tpu_custom_call.1']
    #allocation14 [shape = 'u8[16384]{0}', space=vmem, size = 0x4000, scoped, tag = 'input window, operand 7, single buffered']
    #allocation15 [shape = 'u8[8192]{0}', space=vmem, size = 0x2000, scoped, tag = 'output window, operand 0, single buffered']
    %15 = vsyncpa [#allocation7], 0
    %16 = vsyncpa [#allocation10], 0
    %17 = vsyncpa [#allocation13], 0
    %18 = vsyncpa [#allocation8], 0
    // Predicated region
    $region2: #{tpu_custom_call.1} parent=1 // pred_check
      _
    $region3: #{tpu_custom_call.1} parent=1 // pred_check_branch
      %20 = sbr.rel (0) target = $region5
    $region4: #{tpu_custom_call.1} parent=1 // pred_region
      %22 = vsyncadd [#allocation7], 0
      %s23 = sshll.u32 %s0, 4
      %s24 = int_to_ptr.hbm [resolvable:$true] %s23
      %s25 = sshll.u32 [#allocation6], 4
      %s26 = int_to_ptr.vmem [resolvable:$true] %s25
      %31 = dma.hbm_to_vmem [thread:$0]  %s24, 256, %s26, [#allocation7], 32, 32, 2
    $region5: #{tpu_custom_call.1} parent=1 // pred_fallthru
      _
    // Predicated region
    $region6: #{tpu_custom_call.1} parent=1 // pred_check
      _
    $region7: #{tpu_custom_call.1} parent=1 // pred_check_branch
      %33 = sbr.rel (0) target = $region9
    $region8: #{tpu_custom_call.1} parent=1 // pred_region
      _
    $region9: #{tpu_custom_call.1} parent=1 // pred_fallthru
      _
    // Predicated region
    $region10: #{tpu_custom_call.1} parent=1 // pred_check
      _
    $region11: #{tpu_custom_call.1} parent=1 // pred_check_branch
      %35 = sbr.rel (0) target = $region13
    $region12: #{tpu_custom_call.1} parent=1 // pred_region
      %37 = vsyncadd [#allocation10], 0
      %s38 = sshll.u32 %s2, 4
      %s39 = int_to_ptr.hbm [resolvable:$true] %s38
      %s40 = sshll.u32 [#allocation9], 4
      %s41 = int_to_ptr.vmem [resolvable:$true] %s40
      %46 = dma.hbm_to_vmem [thread:$0]  %s39, 512, %s41, [#allocation10], 128, 128, 8
    $region13: #{tpu_custom_call.1} parent=1 // pred_fallthru
      _
    // Predicated region
    $region14: #{tpu_custom_call.1} parent=1 // pred_check
      _
    $region15: #{tpu_custom_call.1} parent=1 // pred_check_branch
      %48 = sbr.rel (0) target = $region17
    $region16: #{tpu_custom_call.1} parent=1 // pred_region
      %50 = vsyncadd [#allocation10], 0
      %s51 = sshll.u32 %s3, 4
      %s52 = int_to_ptr.hbm [resolvable:$true] %s51
      %s53 = sshll.u32 [#allocation11], 4
      %s54 = int_to_ptr.vmem [resolvable:$true] %s53
      %59 = dma.hbm_to_vmem [thread:$0]  %s52, 512, %s54, [#allocation10], 128, 128, 8
    $region17: #{tpu_custom_call.1} parent=1 // pred_fallthru
      _
    // Predicated region
    $region18: #{tpu_custom_call.1} parent=1 // pred_check
      _
    $region19: #{tpu_custom_call.1} parent=1 // pred_check_branch
      %61 = sbr.rel (0) target = $region21
    $region20: #{tpu_custom_call.1} parent=1 // pred_region
      _
    $region21: #{tpu_custom_call.1} parent=1 // pred_fallthru
      _
    // Predicated region
    $region22: #{tpu_custom_call.1} parent=1 // pred_check
      _
    $region23: #{tpu_custom_call.1} parent=1 // pred_check_branch
      %63 = sbr.rel (0) target = $region25
    $region24: #{tpu_custom_call.1} parent=1 // pred_region
      _
    $region25: #{tpu_custom_call.1} parent=1 // pred_fallthru
      _
    // Predicated region
    $region26: #{tpu_custom_call.1} parent=1 // pred_check
      _
    $region27: #{tpu_custom_call.1} parent=1 // pred_check_branch
      %65 = sbr.rel (0) target = $region29
    $region28: #{tpu_custom_call.1} parent=1 // pred_region
      %67 = vsyncadd [#allocation13], 0
      %s68 = sshll.u32 %s6, 4
      %s69 = int_to_ptr.hbm [resolvable:$true] %s68
      %s70 = sshll.u32 [#allocation12], 4
      %s71 = int_to_ptr.vmem [resolvable:$true] %s70
      %76 = dma.hbm_to_vmem [thread:$0]  %s69, 512, %s71, [#allocation13], 128, 128, 8
    $region29: #{tpu_custom_call.1} parent=1 // pred_fallthru
      _
    // Predicated region
    $region30: #{tpu_custom_call.1} parent=1 // pred_check
      _
    $region31: #{tpu_custom_call.1} parent=1 // pred_check_branch
      %78 = sbr.rel (0) target = $region33
    $region32: #{tpu_custom_call.1} parent=1 // pred_region
      %80 = vsyncadd [#allocation13], 0
      %s81 = sshll.u32 %s7, 4
      %s82 = int_to_ptr.hbm [resolvable:$true] %s81
      %s83 = sshll.u32 [#allocation14], 4
      %s84 = int_to_ptr.vmem [resolvable:$true] %s83
      %89 = dma.hbm_to_vmem [thread:$0]  %s82, 512, %s84, [#allocation13], 128, 128, 8
    $region33: #{tpu_custom_call.1} parent=1 // pred_fallthru
      _
    // Predicated region
    $region34: #{tpu_custom_call.1} parent=1 // pred_check
      _
    $region35: #{tpu_custom_call.1} parent=1 // pred_check_branch
      %91 = sbr.rel (0) target = $region37
    $region36: #{tpu_custom_call.1} parent=1 // pred_region
      _
    $region37: #{tpu_custom_call.1} parent=1 // pred_fallthru
      _
    // Predicated region
    $region38: #{tpu_custom_call.1} parent=1 // pred_check
      _
    $region39: #{tpu_custom_call.1} parent=1 // pred_check_branch
      %93 = sbr.rel (0) target = $region41
    $region40: #{tpu_custom_call.1} parent=1 // pred_region
      _
    $region41: #{tpu_custom_call.1} parent=1 // pred_fallthru
      _
    // Predicated region
    $region42: #{tpu_custom_call.1} parent=1 // pred_check
      _
    $region43: #{tpu_custom_call.1} parent=1 // pred_check_branch
      %95 = sbr.rel (0) target = $region45
    $region44: #{tpu_custom_call.1} parent=1 // pred_region
      %97 = dma.done [#allocation7], 256
    $region45: #{tpu_custom_call.1} parent=1 // pred_fallthru
      _
    // Predicated region
    $region46: #{tpu_custom_call.1} parent=1 // pred_check
      _
    $region47: #{tpu_custom_call.1} parent=1 // pred_check_branch
      %99 = sbr.rel (0) target = $region49
    $region48: #{tpu_custom_call.1} parent=1 // pred_region
      %101 = dma.done [#allocation10], 512
    $region49: #{tpu_custom_call.1} parent=1 // pred_fallthru
      _
    // Predicated region
    $region50: #{tpu_custom_call.1} parent=1 // pred_check
      _
    $region51: #{tpu_custom_call.1} parent=1 // pred_check_branch
      %103 = sbr.rel (0) target = $region53
    $region52: #{tpu_custom_call.1} parent=1 // pred_region
      %105 = dma.done [#allocation10], 512
    $region53: #{tpu_custom_call.1} parent=1 // pred_fallthru
      _
    // Predicated region
    $region54: #{tpu_custom_call.1} parent=1 // pred_check
      _
    $region55: #{tpu_custom_call.1} parent=1 // pred_check_branch
      %107 = sbr.rel (0) target = $region57
    $region56: #{tpu_custom_call.1} parent=1 // pred_region
      %109 = dma.done [#allocation13], 512
    $region57: #{tpu_custom_call.1} parent=1 // pred_fallthru
      _
    // Predicated region
    $region58: #{tpu_custom_call.1} parent=1 // pred_check
      _
    $region59: #{tpu_custom_call.1} parent=1 // pred_check_branch
      %111 = sbr.rel (0) target = $region61
    $region60: #{tpu_custom_call.1} parent=1 // pred_region
      %113 = dma.done [#allocation13], 512
    $region61: #{tpu_custom_call.1} parent=1 // pred_fallthru
      _
    %v114 = vld [vmem:[#allocation6] sm:$0x3]
    %v115 = vld [vmem:[#allocation6 + $0x2] sm:$0x3]
    %v116 = vld [vmem:[#allocation6 + $0x4] sm:$0x3]
    %v117 = vld [vmem:[#allocation6 + $0x6] sm:$0x3]
    %v118 = vld [vmem:[#allocation6 + $0x8] sm:$0x3]
    %v119 = vld [vmem:[#allocation6 + $0xa] sm:$0x3]
    %v120 = vld [vmem:[#allocation6 + $0xc] sm:$0x3]
    %v121 = vld [vmem:[#allocation6 + $0xe] sm:$0x3]
    %v122 = vld [vmem:[#allocation9] sm:$0xff]
    %v123 = vld [vmem:[#allocation9 + $0x8] sm:$0xff]
    %v124 = vld [vmem:[#allocation9 + $0x10] sm:$0xff]
    %v125 = vld [vmem:[#allocation9 + $0x18] sm:$0xff]
    %v126 = vld [vmem:[%s4] sm:$0x1]
    %v128 = vperm.slane %v126, 0
    %138 = vst [vmem:[#allocation1] ss:$4 sm:$0xff] %v114
    %s139 = scalar_lea.vmem [#allocation1], 1
    %140 = vst [vmem:[%s139] ss:$4 sm:$0xff] %v115
    %s141 = scalar_lea.vmem [#allocation1], 2
    %142 = vst [vmem:[%s141] ss:$4 sm:$0xff] %v116
    %s143 = scalar_lea.vmem [#allocation1], 3
    %144 = vst [vmem:[%s143] ss:$4 sm:$0xff] %v117
    %s145 = scalar_lea.vmem [#allocation1], 32
    %146 = vst [vmem:[%s145] ss:$4 sm:$0xff] %v118
    %s147 = scalar_lea.vmem [#allocation1], 33
    %148 = vst [vmem:[%s147] ss:$4 sm:$0xff] %v119
    %s149 = scalar_lea.vmem [#allocation1], 34
    %150 = vst [vmem:[%s149] ss:$4 sm:$0xff] %v120
    %s151 = scalar_lea.vmem [#allocation1], 35
    %152 = vst [vmem:[%s151] ss:$4 sm:$0xff] %v121
    %v153 = vld.sshfl [vmem:[#allocation1] sm:$0xff pattern:$0x73625140]
    %v154 = vld.sshfl [vmem:[#allocation1 + $0x20] sm:$0xff pattern:$0x73625140]
    %vm155 = vcmask 261120
    %v156 = vsel %vm155, %v153, 0
    %v158 = vsel %vm155, %v154, 0
    %160 = vmatpush.msra.mxu0 0.0
    %161 = vmatpush.msra.mxu0 0.0
    %162 = vmatpush.msra.mxu0 0.0
    %163 = vmatpush.msra.mxu0 0.0
    %164 = vmatpush.msra.mxu0 0.0
    %165 = vmatpush.msra.mxu0 0.0
    %166 = vmatpush.msra.mxu0 0.0
    %167 = vmatpush.msra.mxu0 0.0
    %168 = vmatpush.msra.mxu0 0.0
    %169 = vmatpush.msra.mxu0 0.0
    %170 = vmatpush.msra.mxu0 0.0
    %171 = vmatpush.msra.mxu0 0.0
    %172 = vmatpush.msra.mxu0 %v125
    %173 = vmatpush.msra.mxu0 %v124
    %174 = vmatpush.msra.mxu0 %v123
    %175 = vmatpush.msra.mxu0 %v122
    %176 = vmatmul.f32.gmra.mxu0 %v156
    %v177 = vpop.f32.mrf.mxu0
    %v178 = vadd.f32 %v128, %v177
    %179 = vmatmul.f32.gmra.mxu0 %v158
    %v180 = vpop.f32.mrf.mxu0
    %v181 = vadd.f32 %v128, %v180
    %182 = vdwg.mxu0
    %v185 = vrot.slane %v178, 2
    %v186 = vrot.slane %v178, 4
    %v187 = vrot.slane %v178, 6
    %v188 = vrot.slane %v181, 2
    %v189 = vrot.slane %v181, 4
    %v190 = vrot.slane %v181, 6
    %vm197 = vcmask 779264
    %198 = vst.msk [vmem:[#allocation2] sm:$0x3] %vm197, %v178
    %199 = vst.msk [vmem:[#allocation2 + $0x2] sm:$0x3] %vm197, %v185
    %200 = vst.msk [vmem:[#allocation2 + $0x4] sm:$0x3] %vm197, %v186
    %201 = vst.msk [vmem:[#allocation2 + $0x6] sm:$0x3] %vm197, %v187
    %202 = vst.msk [vmem:[#allocation2 + $0x8] sm:$0x3] %vm197, %v181
    %203 = vst.msk [vmem:[#allocation2 + $0xa] sm:$0x3] %vm197, %v188
    %204 = vst.msk [vmem:[#allocation2 + $0xc] sm:$0x3] %vm197, %v189
    %205 = vst.msk [vmem:[#allocation2 + $0xe] sm:$0x3] %vm197, %v190
    %v206 = vld [vmem:[#allocation6] sm:$0x3]
    %v207 = vld [vmem:[#allocation6 + $0x2] sm:$0x3]
    %v208 = vld [vmem:[#allocation6 + $0x4] sm:$0x3]
    %v209 = vld [vmem:[#allocation6 + $0x6] sm:$0x3]
    %v210 = vld [vmem:[#allocation6 + $0x8] sm:$0x3]
    %v211 = vld [vmem:[#allocation6 + $0xa] sm:$0x3]
    %v212 = vld [vmem:[#allocation6 + $0xc] sm:$0x3]
    %v213 = vld [vmem:[#allocation6 + $0xe] sm:$0x3]
    %v214 = vld [vmem:[#allocation12] sm:$0xff]
    %v215 = vld [vmem:[#allocation12 + $0x8] sm:$0xff]
    %v216 = vld [vmem:[#allocation12 + $0x10] sm:$0xff]
    %v217 = vld [vmem:[#allocation12 + $0x18] sm:$0xff]
    %v218 = vld [vmem:[%s8] sm:$0x1]
    %v220 = vperm.slane %v218, 0
    %230 = vst [vmem:[#allocation1] ss:$4 sm:$0xff] %v206
    %s231 = scalar_lea.vmem [#allocation1], 1
    %232 = vst [vmem:[%s231] ss:$4 sm:$0xff] %v207
    %s233 = scalar_lea.vmem [#allocation1], 2
    %234 = vst [vmem:[%s233] ss:$4 sm:$0xff] %v208
    %s235 = scalar_lea.vmem [#allocation1], 3
    %236 = vst [vmem:[%s235] ss:$4 sm:$0xff] %v209
    %s237 = scalar_lea.vmem [#allocation1], 32
    %238 = vst [vmem:[%s237] ss:$4 sm:$0xff] %v210
    %s239 = scalar_lea.vmem [#allocation1], 33
    %240 = vst [vmem:[%s239] ss:$4 sm:$0xff] %v211
    %s241 = scalar_lea.vmem [#allocation1], 34
    %242 = vst [vmem:[%s241] ss:$4 sm:$0xff] %v212
    %s243 = scalar_lea.vmem [#allocation1], 35
    %244 = vst [vmem:[%s243] ss:$4 sm:$0xff] %v213
    %v245 = vld.sshfl [vmem:[#allocation1] sm:$0xff pattern:$0x73625140]
    %v246 = vld.sshfl [vmem:[#allocation1 + $0x20] sm:$0xff pattern:$0x73625140]
    %v247 = vsel %vm155, %v245, 0
    %v249 = vsel %vm155, %v246, 0
    %251 = vmatpush.msra.mxu0 0.0
    %252 = vmatpush.msra.mxu0 0.0
    %253 = vmatpush.msra.mxu0 0.0
    %254 = vmatpush.msra.mxu0 0.0
    %255 = vmatpush.msra.mxu0 0.0
    %256 = vmatpush.msra.mxu0 0.0
    %257 = vmatpush.msra.mxu0 0.0
    %258 = vmatpush.msra.mxu0 0.0
    %259 = vmatpush.msra.mxu0 0.0
    %260 = vmatpush.msra.mxu0 0.0
    %261 = vmatpush.msra.mxu0 0.0
    %262 = vmatpush.msra.mxu0 0.0
    %263 = vmatpush.msra.mxu0 %v217
    %264 = vmatpush.msra.mxu0 %v216
    %265 = vmatpush.msra.mxu0 %v215
    %266 = vmatpush.msra.mxu0 %v214
    %267 = vmatmul.f32.gmra.mxu0 %v247
    %v268 = vpop.f32.mrf.mxu0
    %v269 = vadd.f32 %v220, %v268
    %270 = vmatmul.f32.gmra.mxu0 %v249
    %v271 = vpop.f32.mrf.mxu0
    %v272 = vadd.f32 %v220, %v271
    %273 = vdwg.mxu0
    %v276 = vrot.slane %v269, 2
    %v277 = vrot.slane %v269, 4
    %v278 = vrot.slane %v269, 6
    %v279 = vrot.slane %v272, 2
    %v280 = vrot.slane %v272, 4
    %v281 = vrot.slane %v272, 6
    %288 = vst.msk [vmem:[#allocation3] sm:$0x3] %vm197, %v269
    %289 = vst.msk [vmem:[#allocation3 + $0x2] sm:$0x3] %vm197, %v276
    %290 = vst.msk [vmem:[#allocation3 + $0x4] sm:$0x3] %vm197, %v277
    %291 = vst.msk [vmem:[#allocation3 + $0x6] sm:$0x3] %vm197, %v278
    %292 = vst.msk [vmem:[#allocation3 + $0x8] sm:$0x3] %vm197, %v272
    %293 = vst.msk [vmem:[#allocation3 + $0xa] sm:$0x3] %vm197, %v279
    %294 = vst.msk [vmem:[#allocation3 + $0xc] sm:$0x3] %vm197, %v280
    %295 = vst.msk [vmem:[#allocation3 + $0xe] sm:$0x3] %vm197, %v281
    %vm296 = vcmask 254976
    %297 = vst.msk [vmem:[#allocation4] sm:$0x3] %vm296, 0.0
    %298 = vst.msk [vmem:[#allocation5] sm:$0x3] %vm296, 0.0
    %299 = vst.msk [vmem:[#allocation15] sm:$0x3] %vm296, 0.0
    %300 = vst.msk [vmem:[#allocation15 + $0x2] sm:$0x3] %vm296, 0.0
    %301 = vst.msk [vmem:[#allocation15 + $0x4] sm:$0x3] %vm296, 0.0
    %302 = vst.msk [vmem:[#allocation15 + $0x6] sm:$0x3] %vm296, 0.0
    %303 = vst.msk [vmem:[#allocation15 + $0x8] sm:$0x3] %vm296, 0.0
    %304 = vst.msk [vmem:[#allocation15 + $0xa] sm:$0x3] %vm296, 0.0
    %305 = vst.msk [vmem:[#allocation15 + $0xc] sm:$0x3] %vm296, 0.0
    %306 = vst.msk [vmem:[#allocation15 + $0xe] sm:$0x3] %vm296, 0.0
    %v307 = vld [vmem:[%s1] sm:$0x3]
    %v308 = vld [vmem:[#allocation11] sm:$0xff]
    %v309 = vld [vmem:[#allocation11 + $0x8] sm:$0xff]
    %v310 = vld [vmem:[#allocation11 + $0x10] sm:$0xff]
    %v311 = vld [vmem:[#allocation11 + $0x18] sm:$0xff]
    %v312 = vld [vmem:[#allocation14] sm:$0xff]
    %v313 = vld [vmem:[#allocation14 + $0x8] sm:$0xff]
    %v314 = vld [vmem:[#allocation14 + $0x10] sm:$0xff]
    %v315 = vld [vmem:[#allocation14 + $0x18] sm:$0xff]
    %v316 = vld [vmem:[%s5] sm:$0x1]
    %v318 = vperm.slane %v316, 0
    %v319 = vld [vmem:[%s9] sm:$0x1]
    %v321 = vperm.slane %v319, 0
    loop: start=0, step=1, limit=8
    $region62: #{tpu_custom_call.1} parent=1 // loop_pre_header
      _
    $region63: #{tpu_custom_call.1} parent=1 // loop_header
      %s323 = sphi 0, %s327
      %p324 = scmp.ge.s32.totalorder %s323, 8
    $region64: #{tpu_custom_call.1} parent=1 // loop_header_branch
      %326 = sbr.rel (%p324) target = $region68
    $region65: #{tpu_custom_call.1} parent=1 // loop_body
      %s328 = ssub.s32 7, %s323
      %v329 = vld [vmem:[#allocation4] sm:$0x3]
      %s330 = smul.u32 %s323, 2
      %s331 = scalar_lea.vmem [#allocation2], %s330
      %v332 = vld [vmem:[%s331] sm:$0x3]
      %v334 = vsel %vm155, %v329, 0
      %336 = vmatpush.msra.mxu0 0.0
      %337 = vmatpush.msra.mxu0 0.0
      %338 = vmatpush.msra.mxu0 0.0
      %339 = vmatpush.msra.mxu0 0.0
      %340 = vmatpush.msra.mxu0 0.0
      %341 = vmatpush.msra.mxu0 0.0
      %342 = vmatpush.msra.mxu0 0.0
      %343 = vmatpush.msra.mxu0 0.0
      %344 = vmatpush.msra.mxu0 0.0
      %345 = vmatpush.msra.mxu0 0.0
      %346 = vmatpush.msra.mxu0 0.0
      %347 = vmatpush.msra.mxu0 0.0
      %348 = vmatpush.msra.mxu0 %v311
      %349 = vmatpush.msra.mxu0 %v310
      %350 = vmatpush.msra.mxu0 %v309
      %351 = vmatpush.msra.mxu0 %v308
      %352 = vmatmul.f32.gmra.mxu0 %v334
      %v353 = vpop.f32.mrf.mxu0
      %v354 = vadd.f32 0.0, %v353
      %355 = vdwg.mxu0
      %v356 = vadd.f32 %v332, %v354
      %v357 = vxor.u32 %v356, 2147483648
      %v358 = vmul.f32 %v357, 1.442695
      %v359 = vpow.pop %v358
      %v360 = vadd.f32 %v359, 1.0
      %v361 = vrcp.pop %v360
      %v362 = vmul.f32 %v360, %v361
      %v363 = vsub.f32 1.0, %v362
      %v364 = vmul.f32 %v361, %v363
      %v365 = vadd.f32 %v361, %v364
      %vm366 = vweird.f32 %v360
      %vm367 = vweird.f32 %v361
      %vm368 = vmor %vm366, %vm367
      %v369 = vsel %vm368, %v361, %v365
      %v370 = vand.u32 2147483647, %v360
      %vm371 = vcmp.eq.f32.partialorder %v370, 8.507059e+37
      %v372 = vand.u32 %v360, 2147483648
      %v373 = vor.u32 1.1754944e-38, %v372
      %v374 = vsel %vm371, %v373, %v369
      %v375 = vmul.f32 1.0, %v374
      %376 = vrot.lane.b32.xlu0 %v318, 64
      %v377 = vpop.permute.xlu0 %376
      %v379 = vadd.f32 %v354, %v377
      %381 = vrot.lane.b32.xlu0 %v379, 64
      %v382 = vpop.permute.xlu0 %381
      %v384 = vmul.f32 %v375, %v382
      %386 = vrot.lane.b32.xlu0 %v384, 64
      %v387 = vpop.permute.xlu0 %386
      %v389 = vadd.f32 %v332, %v387
      %v390 = vtanh.pop %v389
      %v391 = vsub.f32 1.0, %v375
      %393 = vrot.lane.b32.xlu0 %v390, 96
      %v394 = vpop.permute.xlu0 %393
      %v396 = vmul.f32 %v391, %v394
      %397 = vrot.lane.b32.xlu0 %v329, 32
      %v398 = vpop.permute.xlu0 %397
      %v400 = vmul.f32 %v375, %v398
      %v401 = vadd.f32 %v396, %v400
      %v402 = vstv %s323
      %vm403 = vcmp.gt.s32.totalorder %v307, %v402
      %v404 = vsel %vm403, 1, 0
      %405 = vset.pattern.permute.xlu0 0
      %406 = vperm.xlu0 %405, %v404
      %v407 = vpop.permute.xlu0 %406
      %vm408 = vcmp.eq.s32.totalorder %v407, 1
      %v409 = vsel %vm408, %v401, %v398
      %411 = vrot.lane.b32.xlu0 %v409, 96
      %v412 = vpop.permute.xlu0 %411
      %414 = vst.msk [vmem:[#allocation4] sm:$0x3] %vm296, %v412
      %v415 = vsel %vm408, %v401, 0.0
      %v416 = vld [vmem:[#allocation5] sm:$0x3]
      %s417 = smul.u32 %s328, 2
      %s418 = scalar_lea.vmem [#allocation3], %s417
      %v419 = vld [vmem:[%s418] sm:$0x3]
      %v421 = vsel %vm155, %v416, 0
      %423 = vmatpush.msra.mxu0 0.0
      %424 = vmatpush.msra.mxu0 0.0
      %425 = vmatpush.msra.mxu0 0.0
      %426 = vmatpush.msra.mxu0 0.0
      %427 = vmatpush.msra.mxu0 0.0
      %428 = vmatpush.msra.mxu0 0.0
      %429 = vmatpush.msra.mxu0 0.0
      %430 = vmatpush.msra.mxu0 0.0
      %431 = vmatpush.msra.mxu0 0.0
      %432 = vmatpush.msra.mxu0 0.0
      %433 = vmatpush.msra.mxu0 0.0
      %434 = vmatpush.msra.mxu0 0.0
      %435 = vmatpush.msra.mxu0 %v315
      %436 = vmatpush.msra.mxu0 %v314
      %437 = vmatpush.msra.mxu0 %v313
      %438 = vmatpush.msra.mxu0 %v312
      %439 = vmatmul.f32.gmra.mxu0 %v421
      %v440 = vpop.f32.mrf.mxu0
      %v441 = vadd.f32 0.0, %v440
      %442 = vdwg.mxu0
      %v443 = vadd.f32 %v419, %v441
      %v444 = vxor.u32 %v443, 2147483648
      %v445 = vmul.f32 %v444, 1.442695
      %v446 = vpow.pop %v445
      %v447 = vadd.f32 %v446, 1.0
      %v448 = vrcp.pop %v447
      %v449 = vmul.f32 %v447, %v448
      %v450 = vsub.f32 1.0, %v449
      %v451 = vmul.f32 %v448, %v450
      %v452 = vadd.f32 %v448, %v451
      %vm453 = vweird.f32 %v447
      %vm454 = vweird.f32 %v448
      %vm455 = vmor %vm453, %vm454
      %v456 = vsel %vm455, %v448, %v452
      %v457 = vand.u32 2147483647, %v447
      %vm458 = vcmp.eq.f32.partialorder %v457, 8.507059e+37
      %v459 = vand.u32 %v447, 2147483648
      %v460 = vor.u32 1.1754944e-38, %v459
      %v461 = vsel %vm458, %v460, %v456
      %v462 = vmul.f32 1.0, %v461
      %463 = vrot.lane.b32.xlu0 %v321, 64
      %v464 = vpop.permute.xlu0 %463
      %v466 = vadd.f32 %v441, %v464
      %468 = vrot.lane.b32.xlu0 %v466, 64
      %v469 = vpop.permute.xlu0 %468
      %v471 = vmul.f32 %v462, %v469
      %473 = vrot.lane.b32.xlu0 %v471, 64
      %v474 = vpop.permute.xlu0 %473
      %v476 = vadd.f32 %v419, %v474
      %v477 = vtanh.pop %v476
      %v478 = vsub.f32 1.0, %v462
      %480 = vrot.lane.b32.xlu0 %v477, 96
      %v481 = vpop.permute.xlu0 %480
      %v483 = vmul.f32 %v478, %v481
      %484 = vrot.lane.b32.xlu0 %v416, 32
      %v485 = vpop.permute.xlu0 %484
      %v487 = vmul.f32 %v462, %v485
      %v488 = vadd.f32 %v483, %v487
      %v489 = vstv %s328
      %vm490 = vcmp.gt.s32.totalorder %v307, %v489
      %v491 = vsel %vm490, 1, 0
      %492 = vset.pattern.permute.xlu0 0
      %493 = vperm.xlu0 %492, %v491
      %v494 = vpop.permute.xlu0 %493
      %vm495 = vcmp.eq.s32.totalorder %v494, 1
      %v496 = vsel %vm495, %v488, %v485
      %498 = vrot.lane.b32.xlu0 %v496, 96
      %v499 = vpop.permute.xlu0 %498
      %501 = vst.msk [vmem:[#allocation5] sm:$0x3] %vm296, %v499
      %v502 = vsel %vm495, %v488, 0.0
      %s503 = scalar_lea.vmem [#allocation15], %s330
      %v504 = vld [vmem:[%s503] sm:$0x3]
      %v505 = vmul.f32 %v415, 0.5
      %507 = vrot.lane.b32.xlu0 %v505, 96
      %v508 = vpop.permute.xlu0 %507
      %v510 = vadd.f32 %v504, %v508
      %511 = vst.msk [vmem:[%s503] sm:$0x3] %vm296, %v510
      %s512 = scalar_lea.vmem [#allocation15], %s417
      %v513 = vld [vmem:[%s512] sm:$0x3]
      %v514 = vmul.f32 %v502, 0.5
      %516 = vrot.lane.b32.xlu0 %v514, 96
      %v517 = vpop.permute.xlu0 %516
      %v519 = vadd.f32 %v513, %v517
      %520 = vst.msk [vmem:[%s512] sm:$0x3] %vm296, %v519
    $region66: #{tpu_custom_call.1} parent=1 // loop_footer
      %s327 = sadd.s32 1, %s323
    $region67: #{tpu_custom_call.1} parent=1 // loop_footer_branch
      %322 = sbr.rel target = $region63
    $region68: #{tpu_custom_call.1} parent=1 // loop_exit
      _
    // Predicated region
    $region69: #{tpu_custom_call.1} parent=1 // pred_check
      _
    $region70: #{tpu_custom_call.1} parent=1 // pred_check_branch
      %522 = sbr.rel (0) target = $region72
    $region71: #{tpu_custom_call.1} parent=1 // pred_region
      %524 = vsyncadd [#allocation8], 0
      %s525 = sshll.u32 [#allocation15], 4
      %s526 = int_to_ptr.vmem [resolvable:$true] %s525
      %s527 = sshll.u32 %s10, 4
      %s528 = int_to_ptr.hbm [resolvable:$true] %s527
      %533 = dma.vmem_to_hbm [thread:$0]  %s526, 256, %s528, [#allocation8], 32, 32, 2
    $region72: #{tpu_custom_call.1} parent=1 // pred_fallthru
      _
    // Predicated region
    $region73: #{tpu_custom_call.1} parent=1 // pred_check
      _
    $region74: #{tpu_custom_call.1} parent=1 // pred_check_branch
      %535 = sbr.rel (0) target = $region76
    $region75: #{tpu_custom_call.1} parent=1 // pred_region
      %537 = dma.done [#allocation8], 256
    $region76: #{tpu_custom_call.1} parent=1 // pred_fallthru
      _
    %538 = vsyncpa [#allocation7], 1
    %539 = vsyncpa [#allocation10], 1
    %540 = vsyncpa [#allocation13], 1
    %541 = vsyncpa [#allocation8], 1

</llo_original>
